<compile_context>
chip_gen: v6e
topology: v6e:2x2x1
jax: 0.10.0
libtpu: 0.0.40
codegen_flags: <defaults>
</compile_context>

<pallas_src>
import jax
import jax.numpy as jnp
from jax.experimental import pallas as pl
from jax.experimental.pallas import tpu as pltpu


def _vmem_limit_bytes():
    """Scoped-VMEM budget derived from the actual chip; safe fallback = v7x's 64 MiB."""
    try:
        cap = int(pltpu.get_tpu_info().vmem_capacity_bytes)
    except Exception:
        cap = 64 * 1024 * 1024
    return max(32 * 1024 * 1024, min(3 * cap // 4, 100 * 1024 * 1024))


def _pick_token_tile(t_tokens, per_tok_bytes, fixed_bytes, budget_bytes,
                     quantum=128, cap=2048):
    """Largest multiple of 128 tokens that fits the VMEM budget (capped at `cap`)."""
    t_needed = ((t_tokens + quantum - 1) // quantum) * quantum
    avail = budget_bytes - fixed_bytes
    tile = (avail // per_tok_bytes) // quantum * quantum if avail > per_tok_bytes else quantum
    tile = max(quantum, min(cap, tile))
    return min(tile, t_needed)


def _pick_h_tile(h, per_col_bytes, fixed_bytes, budget_bytes, quantum=128, cap=4096):
    """Largest multiple of 128 dividing `h` that fits the budget; full `h` if not lane-quantized."""
    if h % quantum != 0:
        return h
    best = quantum
    t = quantum
    while t <= min(cap, h):
        if h % t == 0 and fixed_bytes + per_col_bytes * t <= budget_bytes:
            best = t
        t += quantum
    return best


# --------------------------------------------------------------------------------------
# Phase A: gating + top-2 dispatch per token tile (transposed, lane-dense layout);
#          per-core expert_inputs accumulated in a VMEM-resident f32 output.
# --------------------------------------------------------------------------------------
def _gate_dispatch_kernel(x_ref, wg_ref, ew_ref, dispatch_ref, ei_ref):
    # x_ref: (tT, D) bf16 streamed   wg_ref: (E, D) bf16 resident   ew_ref: (E, 1) f32 resident
    # dispatch_ref: (E, tT) bf16 out per tile (tokens on the 128-lane axis)
    # ei_ref: (E, D) f32 out, per-core VMEM-resident accumulator across the inner grid axis
    E = wg_ref.shape[0]

    @pl.when(pl.program_id(1) == 0)
    def _init():
        ei_ref[...] = jnp.zeros_like(ei_ref)

    x = x_ref[...]  # (tT, D) bf16

    # logits^T = Wg @ x^T : (E, tT); bf16 MXU operands, f32 accumulation (AMP-style gate()).
    logits = jax.lax.dot_general(
        wg_ref[...], x, (((1,), (1,)), ((), ())),
        preferred_element_type=jnp.float32,
    ) * ew_ref[...]                                            # (E, tT) f32
    # TODO(synk): optional expert_mask (masked_fill with -inf) not wired through.

    # Softmax numerator only: the denominator cancels in the top-2 renormalization,
    # so dispatch = p / (p_top1 + p_top2) directly (one approx reciprocal).
    p = jnp.exp(logits - jnp.max(logits, axis=0, keepdims=True))   # (E, tT) f32

    row = jax.lax.broadcasted_iota(jnp.int32, p.shape, 0)
    w1 = jnp.max(p, axis=0, keepdims=True)
    i1 = jnp.min(jnp.where(p == w1, row, E), axis=0, keepdims=True)
    m1 = row == i1
    p_rest = jnp.where(m1, -jnp.inf, p)
    w2 = jnp.max(p_rest, axis=0, keepdims=True)
    i2 = jnp.min(jnp.where(p_rest == w2, row, E), axis=0, keepdims=True)
    m2 = row == i2

    disp = jnp.where(m1 | m2, p, 0.0) * pl.reciprocal(w1 + w2, approx=True)
    disp_bf16 = disp.astype(jnp.bfloat16)
    dispatch_ref[...] = disp_bf16                              # lane-dense bf16 store

    # expert_inputs += dispatch @ x   (contract the token axis; bf16 MXU, f32 accumulate).
    ei_ref[...] += jax.lax.dot_general(
        disp_bf16, x, (((1,), (0,)), ((), ())),
        preferred_element_type=jnp.float32,
    )


# --------------------------------------------------------------------------------------
# Phase B: all experts' Linear(D -> H) as one batched MXU dot, streaming weights over H.
# --------------------------------------------------------------------------------------
def _expert_ffn_kernel(ei_ref, we_ref, be_ref, eo_ref):
    # ei_ref: (E, 8, D) bf16 resident (single row pre-broadcast to 8 sublanes in the wrapper)
    # we_ref: (E, tH, D) bf16 streamed over H tiles
    # be_ref: (E, tH) f32            eo_ref: (E, tH) bf16
    acc = jax.lax.dot_general(
        ei_ref[...], we_ref[...], (((2,), (2,)), ((0,), (0,))),
        preferred_element_type=jnp.float32,
    )                                                          # (E, 8, tH) f32, rows identical
    eo_ref[...] = (acc[:, 0, :] + be_ref[...]).astype(eo_ref.dtype)


# --------------------------------------------------------------------------------------
# Phase C: combine — out_tile = dispatch_tile^T @ expert_outputs (2-D tiled, parallel).
# --------------------------------------------------------------------------------------
def _combine_kernel(dispatch_ref, eo_ref, out_ref):
    # dispatch_ref: (E, tT) bf16 streamed   eo_ref: (E, tHc) bf16   out_ref: (tT, tHc)
    out_ref[...] = jax.lax.dot_general(
        dispatch_ref[...], eo_ref[...], (((0,), (0,)), ((), ())),
        preferred_element_type=jnp.float32,
    ).astype(out_ref.dtype)


def optimized_moe_forward(x, gate_w, expert_weights, expert_w, expert_b, *,
                          block_tokens=None, out_dtype=jnp.float32):
    """x: (B, S, D) f32. Returns (B, S, H) `out_dtype`.  (world_size == 1.)"""
    B, S, D = x.shape
    E, H, _ = expert_w.shape
    assert E >= 2, "top-2 routing requires at least 2 experts"
    T = B * S

    vmem_limit = _vmem_limit_bytes()
    budget = int(vmem_limit * 0.6)     # leave headroom for Mosaic-internal scratch

    # ---- token tile (multiple of 128: lane-dense dispatch stores, bf16 packing) -------
    if block_tokens is not None:
        tT = max(128, (int(block_tokens) // 128) * 128)
    else:
        per_tok = 2 * D * 2 + 2 * E * 2          # double-buffered x (bf16) + dispatch (bf16)
        fixed = E * D * (2 + 2 * 4) + 8 * E      # resident gate weight + ei accumulator
        tT = _pick_token_tile(T, per_tok, fixed, budget)
    tT = min(tT, ((T + 127) // 128) * 128)

    num_tiles = pl.cdiv(T, tT)
    C = 2 if num_tiles >= 2 else 1               # megacore split (v7x); harmless on 1-TC chips
    tiles_per_core = pl.cdiv(num_tiles, C)
    T_pad = C * tiles_per_core * tT

    # bf16 at the pallas_call boundary: halves HBM traffic of the big streamed operands
    # and feeds the MXU its native dtype (the PyTorch module runs under AMP autocast).
    x_flat = x.reshape(T, D).astype(jnp.bfloat16)
    if T_pad != T:
        x_flat = jnp.pad(x_flat, ((0, T_pad - T), (0, 0)))     # zero rows contribute nothing
    gw = gate_w.astype(jnp.bfloat16)
    ew2d = expert_weights.reshape(E, 1).astype(jnp.float32)

    # ---- Phase A: gating + dispatch + per-core expert_inputs accumulation -------------
    dispatch, ei_part = pl.pallas_call(
        _gate_dispatch_kernel,
        out_shape=(
            jax.ShapeDtypeStruct((E, T_pad), jnp.bfloat16),     # lane-dense bf16 dispatch
            jax.ShapeDtypeStruct((C, E, D), jnp.float32),       # per-core partial accumulators
        ),
        grid_spec=pltpu.PrefetchScalarGridSpec(
            num_scalar_prefetch=0,
            grid=(C, tiles_per_core),
            in_specs=[
                pl.BlockSpec((tT, D), lambda c, i: (c * tiles_per_core + i, 0)),
                pl.BlockSpec((E, D), lambda c, i: (0, 0)),      # resident gate weight
                pl.BlockSpec((E, 1), lambda c, i: (0, 0)),      # resident expert_weights
            ],
            out_specs=[
                pl.BlockSpec((E, tT), lambda c, i: (0, c * tiles_per_core + i)),
                pl.BlockSpec((None, E, D), lambda c, i: (c, 0, 0)),  # resident per-core acc
            ],
        ),
        compiler_params=pltpu.CompilerParams(
            dimension_semantics=("parallel", "arbitrary"),
            vmem_limit_bytes=vmem_limit,
        ),
    )(x_flat, gw, ew2d)

    expert_inputs = ei_part.sum(axis=0)                         # (E, D) tiny cross-core add

    # ---- Phase B: per-expert Linear, streaming the (E,H,D) weights over H tiles -------
    per_col_b = 2 * E * D * 2 + 2 * E * 4 + 2 * E * 2           # weights + bias + out per H col
    fixed_b = E * 8 * D * 2                                     # resident broadcast inputs
    tH = _pick_h_tile(H, per_col_b, fixed_b, budget)
    # Sublane broadcast hoisted out of the per-tile body (done once, here).
    ei8 = jnp.broadcast_to(expert_inputs.astype(jnp.bfloat16)[:, None, :], (E, 8, D))
    we = expert_w.astype(jnp.bfloat16)
    be = expert_b.astype(jnp.float32)

    expert_outputs = pl.pallas_call(
        _expert_ffn_kernel,
        out_shape=jax.ShapeDtypeStruct((E, H), jnp.bfloat16),
        grid_spec=pltpu.PrefetchScalarGridSpec(
            num_scalar_prefetch=0,
            grid=(H // tH,),
            in_specs=[
                pl.BlockSpec((E, 8, D), lambda h: (0, 0, 0)),    # resident expert inputs
                # TODO(synk): pipeline_mode=pl.Buffered(3) on this spec hides more of the
                # pure-streaming DMA latency when supported; default double-buffering used.
                pl.BlockSpec((E, tH, D), lambda h: (0, h, 0)),   # streamed weights
                pl.BlockSpec((E, tH), lambda h: (0, h)),         # bias
            ],
            out_specs=pl.BlockSpec((E, tH), lambda h: (0, h)),
        ),
        compiler_params=pltpu.CompilerParams(
            dimension_semantics=("parallel",),
            vmem_limit_bytes=vmem_limit,
        ),
    )(ei8, we, be)

    # ---- Phase C: combine, 2-D tiled (token tiles x H tiles), megacore-parallel -------
    out_bytes = 4 if out_dtype == jnp.float32 else 2
    per_col_c = 2 * tT * out_bytes + 2 * E * 2                   # out blocks + eo blocks
    fixed_c = 2 * E * tT * 2                                     # dispatch blocks
    tHc = _pick_h_tile(H, per_col_c, fixed_c, budget)

    out = pl.pallas_call(
        _combine_kernel,
        out_shape=jax.ShapeDtypeStruct((T_pad, H), out_dtype),
        grid_spec=pltpu.PrefetchScalarGridSpec(
            num_scalar_prefetch=0,
            grid=(T_pad // tT, H // tHc),
            in_specs=[
                pl.BlockSpec((E, tT), lambda i, j: (0, i)),      # lane-dense bf16 dispatch
                pl.BlockSpec((E, tHc), lambda i, j: (0, j)),     # expert outputs
            ],
            out_specs=pl.BlockSpec((tT, tHc), lambda i, j: (i, j)),
        ),
        compiler_params=pltpu.CompilerParams(
            dimension_semantics=("parallel", "parallel"),
            vmem_limit_bytes=vmem_limit,
        ),
    )(dispatch, expert_outputs)

    # TODO(synk): world_size > 1 all_reduce path of the module is not implemented.
    return out[:T].reshape(B, S, H)


def _reference(x, gate_w, expert_weights, expert_w, expert_b):
    """Pure-JAX mirror of the PyTorch forward (world_size == 1).

    The gate matmul uses bf16-rounded inputs with f32 accumulation (mirroring the module's
    AMP autocast and the kernel) so both sides pick identical top-2 experts; everything
    downstream is f32.
    """
    B, S, D = x.shape
    E, H, _ = expert_w.shape
    T = B * S
    logits = jnp.einsum(
        "bsd,ed->bse",
        x.astype(jnp.bfloat16), gate_w.astype(jnp.bfloat16),
        preferred_element_type=jnp.float32,
    ) * expert_weights[None, None, :]
    gates = jax.nn.softmax(logits, axis=-1).reshape(T, E)
    top_g, top_i = jax.lax.top_k(gates, 2)
    top_g = top_g / top_g.sum(-1, keepdims=True)
    dispatch = jnp.zeros((E, T), jnp.float32)
    for i in range(2):
        dispatch = dispatch.at[top_i[:, i], jnp.arange(T)].add(top_g[:, i])
    expert_inputs = dispatch @ x.reshape(T, D)                               # (E, D)
    expert_outputs = jnp.einsum("ed,ehd->eh", expert_inputs, expert_w) + expert_b
    combined = dispatch.T @ expert_outputs                                   # (T, H)
    return combined.reshape(B, S, H)


if __name__ == "__main__":
    # Small, lane-dense shapes consistent with the module's forward.
    B, S = 2, 128          # batch, seq_len  -> T = 256 tokens
    D = 128                # input_size
    E = 8                  # num_experts
    H = 256                # expert_size

    key = jax.random.PRNGKey(0)
    k1, k2, k3, k4 = jax.random.split(key, 4)
    x = jax.random.normal(k1, (B, S, D), jnp.float32)
    gate_w = 0.1 * jax.random.normal(k2, (E, D), jnp.float32)        # nn.Linear(D, E, bias=False)
    expert_weights = jnp.ones((E,), jnp.float32)                     # nn.Parameter(torch.ones(E))
    expert_w = 0.05 * jax.random.normal(k3, (E, H, D), jnp.float32)  # per-expert Linear weight
    expert_b = 0.1 * jax.random.normal(k4, (E, H), jnp.float32)      # per-expert Linear bias

    # block_tokens=128 -> 2 token tiles: exercises the per-core accumulator + core split.
    out = optimized_moe_forward(x, gate_w, expert_weights, expert_w, expert_b,
                                block_tokens=128)
    out = jax.block_until_ready(out)

    ref = _reference(x, gate_w, expert_weights, expert_w, expert_b)
    assert out.shape == (B, S, H)
    # bf16 MXU operands / bf16 dispatch (matching the module's AMP autocast) vs f32 reference.
    assert jnp.allclose(out, ref, atol=5e-2, rtol=5e-2), "mismatch vs reference"
    print("KERNEL_OK")
</pallas_src>

<mosaic_0001>
module attributes {stable_mosaic.version = 11 : i64} {
  func.func @_gate_dispatch_kernel(%arg0: i32, %arg1: i32, %arg2: memref<128x128xbf16, #tpu.memory_space<vmem>>, %arg3: memref<8x128xbf16, #tpu.memory_space<vmem>>, %arg4: memref<8x1xf32, #tpu.memory_space<vmem>>, %arg5: memref<8x128xbf16, #tpu.memory_space<vmem>>, %arg6: memref<1x8x128xf32, #tpu.memory_space<vmem>>) attributes {dimension_semantics = [#tpu.dimension_semantics<parallel>, #tpu.dimension_semantics<arbitrary>], iteration_bounds = array<i64: 2, 1>, scalar_prefetch = 0 : i64, scratch_operands = 0 : i64, tpu.core_type = #tpu.core_type<tc>, window_params = [{transform_indices = @transform_0, window_bounds = array<i64: 128, 128>}, {pipeline_mode = #tpu.pipeline_mode<synchronous>, transform_indices = @transform_1, window_bounds = array<i64: 8, 128>}, {pipeline_mode = #tpu.pipeline_mode<synchronous>, transform_indices = @transform_2, window_bounds = array<i64: 8, 1>}, {transform_indices = @transform_3, window_bounds = array<i64: 8, 128>}, {transform_indices = @transform_4, window_bounds = array<i64: 1, 8, 128>}]} {
    %c0_i32 = arith.constant 0 : i32
    %0 = arith.cmpi eq, %arg1, %c0_i32 : i32
    %1 = arith.extui %0 : i1 to i32
    %c0_i32_0 = arith.constant 0 : i32
    %2 = arith.cmpi ne, %1, %c0_i32_0 : i32
    scf.if %2 {
      %cst_23 = arith.constant 0.000000e+00 : f32
      %53 = vector.broadcast %cst_23 : f32 to vector<8x128xf32>
      %c0_24 = arith.constant 0 : index
      %c0_25 = arith.constant 0 : index
      %c0_26 = arith.constant 0 : index
      %54 = vector.load %arg6[%c0_24, %c0_25, %c0_26] : memref<1x8x128xf32, #tpu.memory_space<vmem>>, vector<1x8x128xf32>
      %55 = vector.shape_cast %54 : vector<1x8x128xf32> to vector<8x128xf32>
      %56 = vector.shape_cast %53 : vector<8x128xf32> to vector<1x8x128xf32>
      tpu.vector_store %arg6[%c0_24, %c0_25, %c0_26], %56 {strides = array<i32>} : memref<1x8x128xf32, #tpu.memory_space<vmem>>, vector<1x8x128xf32>,
    } else {
    }
    %c0 = arith.constant 0 : index
    %c0_1 = arith.constant 0 : index
    %3 = vector.load %arg2[%c0, %c0_1] : memref<128x128xbf16, #tpu.memory_space<vmem>>, vector<128x128xbf16>
    %c0_2 = arith.constant 0 : index
    %c0_3 = arith.constant 0 : index
    %4 = vector.load %arg3[%c0_2, %c0_3] : memref<8x128xbf16, #tpu.memory_space<vmem>>, vector<8x128xbf16>
    %cst = arith.constant dense<0.000000e+00> : vector<8x128xf32>
    %5 = tpu.matmul %4, %3, %cst {dimension_numbers = #tpu.dot_dimension_numbers<[1], [1], [0], [0], [0, 0, 1, 0], [], []>} : vector<8x128xbf16>, vector<128x128xbf16>, vector<8x128xf32> -> vector<8x128xf32>
    %c0_4 = arith.constant 0 : index
    %c0_5 = arith.constant 0 : index
    %6 = vector.load %arg4[%c0_4, %c0_5] : memref<8x1xf32, #tpu.memory_space<vmem>>, vector<8x1xf32>
    %7 = vector.broadcast %6 : vector<8x1xf32> to vector<8x128xf32>
    %8 = arith.mulf %5, %7 : vector<8x128xf32>
    %cst_6 = arith.constant dense<0xFF800000> : vector<128xf32>
    %9 = vector.multi_reduction <maximumf>, %8, %cst_6 [0] : vector<8x128xf32> to vector<128xf32>
    %10 = vector.shape_cast %9 : vector<128xf32> to vector<1x128xf32>
    %11 = vector.broadcast %10 : vector<1x128xf32> to vector<8x128xf32>
    %12 = arith.subf %8, %11 : vector<8x128xf32>
    %13 = math.exp %12 : vector<8x128xf32>
    %14 = tpu.iota {dimensions = array<i32: 0>} : vector<8x128xi32>
    %cst_7 = arith.constant dense<0xFF800000> : vector<128xf32>
    %15 = vector.multi_reduction <maximumf>, %13, %cst_7 [0] : vector<8x128xf32> to vector<128xf32>
    %16 = vector.shape_cast %15 : vector<128xf32> to vector<1x128xf32>
    %17 = vector.broadcast %16 : vector<1x128xf32> to vector<8x128xf32>
    %18 = arith.cmpf oeq, %13, %17 : vector<8x128xf32>
    %c8_i32 = arith.constant 8 : i32
    %19 = vector.broadcast %c8_i32 : i32 to vector<8x128xi32>
    %20 = arith.select %18, %14, %19 : vector<8x128xi1>, vector<8x128xi32>
    %cst_8 = arith.constant dense<2147483647> : vector<128xi32>
    %21 = vector.multi_reduction <minsi>, %20, %cst_8 [0] : vector<8x128xi32> to vector<128xi32>
    %22 = vector.shape_cast %21 : vector<128xi32> to vector<1x128xi32>
    %23 = vector.broadcast %22 : vector<1x128xi32> to vector<8x128xi32>
    %24 = arith.cmpi eq, %14, %23 : vector<8x128xi32>
    %cst_9 = arith.constant 0xFF800000 : f32
    %25 = vector.broadcast %cst_9 : f32 to vector<8x128xf32>
    %26 = arith.select %24, %25, %13 : vector<8x128xi1>, vector<8x128xf32>
    %cst_10 = arith.constant dense<0xFF800000> : vector<128xf32>
    %27 = vector.multi_reduction <maximumf>, %26, %cst_10 [0] : vector<8x128xf32> to vector<128xf32>
    %28 = vector.shape_cast %27 : vector<128xf32> to vector<1x128xf32>
    %29 = vector.broadcast %28 : vector<1x128xf32> to vector<8x128xf32>
    %30 = arith.cmpf oeq, %26, %29 : vector<8x128xf32>
    %c8_i32_11 = arith.constant 8 : i32
    %31 = vector.broadcast %c8_i32_11 : i32 to vector<8x128xi32>
    %32 = arith.select %30, %14, %31 : vector<8x128xi1>, vector<8x128xi32>
    %cst_12 = arith.constant dense<2147483647> : vector<128xi32>
    %33 = vector.multi_reduction <minsi>, %32, %cst_12 [0] : vector<8x128xi32> to vector<128xi32>
    %34 = vector.shape_cast %33 : vector<128xi32> to vector<1x128xi32>
    %35 = vector.broadcast %34 : vector<1x128xi32> to vector<8x128xi32>
    %36 = arith.cmpi eq, %14, %35 : vector<8x128xi32>
    %37 = arith.ori %24, %36 : vector<8x128xi1>
    %cst_13 = arith.constant 0.000000e+00 : f32
    %38 = vector.broadcast %cst_13 : f32 to vector<8x128xf32>
    %39 = arith.select %37, %13, %38 : vector<8x128xi1>, vector<8x128xf32>
    %40 = arith.addf %16, %28 : vector<1x128xf32>
    %41 = tpu.reciprocal %40 {approx = true} : vector<1x128xf32> -> vector<1x128xf32>
    %42 = vector.broadcast %41 : vector<1x128xf32> to vector<8x128xf32>
    %43 = arith.mulf %39, %42 : vector<8x128xf32>
    %44 = arith.truncf %43 : vector<8x128xf32> to vector<8x128xbf16>
    %c0_14 = arith.constant 0 : index
    %c0_15 = arith.constant 0 : index
    %45 = vector.load %arg5[%c0_14, %c0_15] : memref<8x128xbf16, #tpu.memory_space<vmem>>, vector<8x128xbf16>
    tpu.vector_store %arg5[%c0_14, %c0_15], %44 {strides = array<i32>} : memref<8x128xbf16, #tpu.memory_space<vmem>>, vector<8x128xbf16>,
    %c0_16 = arith.constant 0 : index
    %c0_17 = arith.constant 0 : index
    %c0_18 = arith.constant 0 : index
    %46 = vector.load %arg6[%c0_16, %c0_17, %c0_18] : memref<1x8x128xf32, #tpu.memory_space<vmem>>, vector<1x8x128xf32>
    %47 = vector.shape_cast %46 : vector<1x8x128xf32> to vector<8x128xf32>
    %cst_19 = arith.constant dense<0.000000e+00> : vector<8x128xf32>
    %48 = tpu.matmul %44, %3, %cst_19 {dimension_numbers = #tpu.dot_dimension_numbers<[1], [0], [0], [1], [0, 0, 1, 1], [], []>} : vector<8x128xbf16>, vector<128x128xbf16>, vector<8x128xf32> -> vector<8x128xf32>
    %49 = arith.addf %47, %48 : vector<8x128xf32>
    %c0_20 = arith.constant 0 : index
    %c0_21 = arith.constant 0 : index
    %c0_22 = arith.constant 0 : index
    %50 = vector.load %arg6[%c0_20, %c0_21, %c0_22] : memref<1x8x128xf32, #tpu.memory_space<vmem>>, vector<1x8x128xf32>
    %51 = vector.shape_cast %50 : vector<1x8x128xf32> to vector<8x128xf32>
    %52 = vector.shape_cast %49 : vector<8x128xf32> to vector<1x8x128xf32>
    tpu.vector_store %arg6[%c0_20, %c0_21, %c0_22], %52 {strides = array<i32>} : memref<1x8x128xf32, #tpu.memory_space<vmem>>, vector<1x8x128xf32>,
    return
  }
  func.func @transform_0(%arg0: i32, %arg1: i32) -> (i32, i32) {
    %c1_i32 = arith.constant 1 : i32
    %0 = arith.muli %arg0, %c1_i32 : i32
    %1 = arith.addi %0, %arg1 : i32
    %c0_i32 = arith.constant 0 : i32
    %c0_i32_0 = arith.constant 0 : i32
    return %1, %c0_i32 : i32, i32
  }
  func.func @transform_1(%arg0: i32, %arg1: i32) -> (i32, i32) {
    %c0_i32 = arith.constant 0 : i32
    %c0_i32_0 = arith.constant 0 : i32
    %c0_i32_1 = arith.constant 0 : i32
    return %c0_i32, %c0_i32_0 : i32, i32
  }
  func.func @transform_2(%arg0: i32, %arg1: i32) -> (i32, i32) {
    %c0_i32 = arith.constant 0 : i32
    %c0_i32_0 = arith.constant 0 : i32
    %c0_i32_1 = arith.constant 0 : i32
    return %c0_i32, %c0_i32_0 : i32, i32
  }
  func.func @transform_3(%arg0: i32, %arg1: i32) -> (i32, i32) {
    %c1_i32 = arith.constant 1 : i32
    %0 = arith.muli %arg0, %c1_i32 : i32
    %1 = arith.addi %0, %arg1 : i32
    %c0_i32 = arith.constant 0 : i32
    %c0_i32_0 = arith.constant 0 : i32
    return %c0_i32, %1 : i32, i32
  }
  func.func @transform_4(%arg0: i32, %arg1: i32) -> (i32, i32, i32) {
    %c0_i32 = arith.constant 0 : i32
    %c0_i32_0 = arith.constant 0 : i32
    %c0_i32_1 = arith.constant 0 : i32
    return %arg0, %c0_i32, %c0_i32_0 : i32, i32, i32
  }
}

</mosaic_0001>

<llo_original>
// kernel: tpu_custom_call.1
$region0: #{tpu_custom_call.1}
  #allocation0 [shape = 'u32[]', space=smem, size = 0x4, offset = 0x4, fixed_abs, tag = 'smem constant byte address 0x4 - core index']
  #allocation1 [shape = 'u32[144,128]{1,0:T(1,128)}', space=vmem, size = 0x12000, scoped, tag = 'internal scratch']
  %s0 = inlined_call_operand.hbm [shape: bf16[256,128], index: 0, kind: input, shape index: {}]
  %s1 = inlined_call_operand.vmem [shape: bf16[8,128], index: 1, kind: input, shape index: {}]
  %s2 = inlined_call_operand.vmem [shape: f32[8,1], index: 2, kind: input, shape index: {}]
  %s3 = inlined_call_operand.hbm [shape: bf16[8,256], index: 3, kind: output, shape index: {0}]
  %s4 = inlined_call_operand.hbm [shape: f32[2,8,128], index: 4, kind: output, shape index: {1}]
  %5 = xla_tuple %s3, %s4
  %s6 = sld [smem:[#allocation0]]
  $region61: #{tpu_custom_call.1} parent=0
    _
  %s8 = ssub.s32 1, %s6
  %s9 = scalar_select 0, %s8, %s6
  $region1: #{tpu_custom_call.1} parent=0
    #allocation2 [shape = 'u8[65536]{0}', space=vmem, size = 0x10000, scoped, tag = 'input window, operand 0']
    #allocation3 [shape = 's32[2]{0}', space=sflag, size = 0x8, scoped, tag = 'scoped memory for tpu_custom_call.1']
    #allocation4 [shape = 's32[2]{0}', space=sflag, size = 0x8, scoped, tag = 'scoped memory for tpu_custom_call.1']
    #allocation5 [shape = 'u8[4096]{0}', space=vmem, size = 0x1000, scoped, tag = 'output window, operand 0']
    #allocation6 [shape = 'u8[8192]{0}', space=vmem, size = 0x2000, scoped, tag = 'output window, operand 1']
    #allocation7 [shape = 's32[2]{0}', space=sflag, size = 0x8, scoped, tag = 'scoped memory for tpu_custom_call.1']
    %10 = vsyncpa [#allocation3], 0
    %s11 = scalar_lea.sflag [#allocation3], 1
    %12 = vsyncpa %s11, 0
    %13 = vsyncpa [#allocation4], 0
    %s14 = scalar_lea.sflag [#allocation4], 1
    %15 = vsyncpa %s14, 0
    %16 = vsyncpa [#allocation7], 0
    %s17 = scalar_lea.sflag [#allocation7], 1
    %18 = vsyncpa %s17, 0
    loop: start=0, step=1, limit=4
    $region2: #{tpu_custom_call.1} parent=1 // loop_pre_header
      _
    $region3: #{tpu_custom_call.1} parent=1 // loop_header
      %s20 = sphi 0, %s24
      %p21 = scmp.ge.s32.totalorder %s20, 4
      %s27 = sphi 0, %s39
      %s28 = sphi 0, %s35
      %s29 = sphi 0, %s27
      %s30 = sphi 0, %s28
      %s31 = sphi 0, %s29
      %s32 = sphi 0, %s30
      %s44 = sphi 0, %s46
      %s47 = sphi 0, %s44
      %s48 = sphi 0, %s47
      %s64 = sphi 0, %s48
      %s68 = sphi 0, %s68
      %s70 = sphi 0, %s68
      %s71 = sphi 0, %s70
      %s85 = sphi 0, %s71
      %s89 = sphi 0, %s89
      %s91 = sphi 0, %s89
      %s92 = sphi 0, %s91
      %s106 = sphi 0, %s92
      %s114 = sphi 0, %s116
      %s117 = sphi 0, %s114
      %s118 = sphi 0, %s117
      %s134 = sphi 0, %s118
      %s140 = sphi 0, %s142
      %s143 = sphi 0, %s140
      %s144 = sphi 0, %s143
      %s160 = sphi 0, %s144
    $region4: #{tpu_custom_call.1} parent=1 // loop_header_branch
      %23 = sbr.rel (%p21) target = $region8
    $region5: #{tpu_custom_call.1} parent=1 // loop_body
      %s25 = ssub.s32 %s20, 1
      %s26 = ssub.s32 %s20, 2
      %s33 = sadd.s32 1, %s28
      %p34 = scmp.ge.s32.totalorder %s33, 1
      %s35 = scalar_select %p34, 0, %s33
      %s36 = sadd.s32 1, %s27
      %s37 = scalar_select %p34, %s36, %s27
      %p38 = scmp.ge.s32.totalorder %s37, 2
      %s39 = scalar_select %p38, 0, %s37
      %s40 = sadd.s32 %s27, %s28
      %s41 = sadd.s32 %s39, %s35
      %s42 = ssub.s32 %s40, %s41
      %p43 = scmp.eq.s32.totalorder %s42, 0
      %s45 = sadd.s32 %s44, 1
      %s46 = scalar_select %p43, %s44, %s45
      %p49 = pneg %p43
      %p50 = scmp.eq.s32.totalorder %s20, 1
      %p51 = por %p49, %p50
      %p52 = scmp.ne.s32.totalorder %s44, %s47
      %p53 = scmp.eq.s32.totalorder %s20, 0
      %p54 = por %p52, %p53
      %p55 = scmp.ne.s32.totalorder %s44, %s47
      %p56 = scmp.eq.s32.totalorder %s25, 1
      %p57 = por %p55, %p56
      %p58 = scmp.ne.s32.totalorder %s47, %s48
      %p59 = scmp.eq.s32.totalorder %s25, 0
      %p60 = por %p58, %p59
      %p61 = scmp.ne.s32.totalorder %s47, %s48
      %p62 = scmp.eq.s32.totalorder %s26, 1
      %p63 = por %p61, %p62
      %p65 = scmp.ne.s32.totalorder %s48, %s64
      %p66 = scmp.eq.s32.totalorder %s26, 0
      %p67 = por %p65, %p66
      %s69 = sadd.s32 %s68, 1
      %p72 = scmp.eq.s32.totalorder %s20, 1
      %p73 = scmp.ne.s32.totalorder %s68, %s70
      %p74 = scmp.eq.s32.totalorder %s20, 0
      %p75 = por %p73, %p74
      %p76 = scmp.ne.s32.totalorder %s68, %s70
      %p77 = scmp.eq.s32.totalorder %s25, 1
      %p78 = por %p76, %p77
      %p79 = scmp.ne.s32.totalorder %s70, %s71
      %p80 = scmp.eq.s32.totalorder %s25, 0
      %p81 = por %p79, %p80
      %p82 = scmp.ne.s32.totalorder %s70, %s71
      %p83 = scmp.eq.s32.totalorder %s26, 1
      %p84 = por %p82, %p83
      %p86 = scmp.ne.s32.totalorder %s71, %s85
      %p87 = scmp.eq.s32.totalorder %s26, 0
      %p88 = por %p86, %p87
      %s90 = sadd.s32 %s89, 1
      %p93 = scmp.eq.s32.totalorder %s20, 1
      %p94 = scmp.ne.s32.totalorder %s89, %s91
      %p95 = scmp.eq.s32.totalorder %s20, 0
      %p96 = por %p94, %p95
      %p97 = scmp.ne.s32.totalorder %s89, %s91
      %p98 = scmp.eq.s32.totalorder %s25, 1
      %p99 = por %p97, %p98
      %p100 = scmp.ne.s32.totalorder %s91, %s92
      %p101 = scmp.eq.s32.totalorder %s25, 0
      %p102 = por %p100, %p101
      %p103 = scmp.ne.s32.totalorder %s91, %s92
      %p104 = scmp.eq.s32.totalorder %s26, 1
      %p105 = por %p103, %p104
      %p107 = scmp.ne.s32.totalorder %s92, %s106
      %p108 = scmp.eq.s32.totalorder %s26, 0
      %p109 = por %p107, %p108
      %s110 = sadd.s32 %s27, %s28
      %s111 = sadd.s32 %s39, %s35
      %s112 = ssub.s32 %s110, %s111
      %p113 = scmp.eq.s32.totalorder %s112, 0
      %s115 = sadd.s32 %s114, 1
      %s116 = scalar_select %p113, %s114, %s115
      %p119 = pneg %p113
      %p120 = scmp.eq.s32.totalorder %s20, 1
      %p121 = por %p119, %p120
      %p122 = scmp.ne.s32.totalorder %s114, %s117
      %p123 = scmp.eq.s32.totalorder %s20, 0
      %p124 = por %p122, %p123
      %p125 = scmp.ne.s32.totalorder %s114, %s117
      %p126 = scmp.eq.s32.totalorder %s25, 1
      %p127 = por %p125, %p126
      %p128 = scmp.ne.s32.totalorder %s117, %s118
      %p129 = scmp.eq.s32.totalorder %s25, 0
      %p130 = por %p128, %p129
      %p131 = scmp.ne.s32.totalorder %s117, %s118
      %p132 = scmp.eq.s32.totalorder %s26, 1
      %p133 = por %p131, %p132
      %p135 = scmp.ne.s32.totalorder %s118, %s134
      %p136 = scmp.eq.s32.totalorder %s26, 0
      %p137 = por %p135, %p136
      %s138 = ssub.s32 %s27, %s39
      %p139 = scmp.eq.s32.totalorder %s138, 0
      %s141 = sadd.s32 %s140, 1
      %s142 = scalar_select %p139, %s140, %s141
      %p145 = pneg %p139
      %p146 = scmp.eq.s32.totalorder %s20, 1
      %p147 = por %p145, %p146
      %p148 = scmp.ne.s32.totalorder %s140, %s143
      %p149 = scmp.eq.s32.totalorder %s20, 0
      %p150 = por %p148, %p149
      %p151 = scmp.ne.s32.totalorder %s140, %s143
      %p152 = scmp.eq.s32.totalorder %s25, 1
      %p153 = por %p151, %p152
      %p154 = scmp.ne.s32.totalorder %s143, %s144
      %p155 = scmp.eq.s32.totalorder %s25, 0
      %p156 = por %p154, %p155
      %p157 = scmp.ne.s32.totalorder %s143, %s144
      %p158 = scmp.eq.s32.totalorder %s26, 1
      %p159 = por %p157, %p158
      %p161 = scmp.ne.s32.totalorder %s144, %s160
      %p162 = scmp.eq.s32.totalorder %s26, 0
      %p163 = por %p161, %p162
      %p164 = scmp.le.s32.totalorder 1, %s20
      %p165 = scmp.lt.s32.totalorder %s20, 3
      %p166 = pnand %p164, %p165
      %p167 = pneg %p166
      // Predicated region
      $region9: #{tpu_custom_call.1} parent=5 // pred_check
        _
      $region10: #{tpu_custom_call.1} parent=5 // pred_check_branch
        %169 = sbr.rel (%p166) target = $region12
      $region11: #{tpu_custom_call.1} parent=5 // pred_region
        %s170 = ssub.s32 %s20, 1
        // Predicated region
        $region13: #{tpu_custom_call.1} parent=11 // pred_check
          %p171 = pneg %p81
        $region14: #{tpu_custom_call.1} parent=11 // pred_check_branch
          %173 = sbr.rel (%p171) target = $region16
        $region15: #{tpu_custom_call.1} parent=11 // pred_region
          _
        $region16: #{tpu_custom_call.1} parent=11 // pred_fallthru
          _
        // Predicated region
        $region17: #{tpu_custom_call.1} parent=11 // pred_check
          %p174 = pneg %p102
        $region18: #{tpu_custom_call.1} parent=11 // pred_check_branch
          %176 = sbr.rel (%p174) target = $region20
        $region19: #{tpu_custom_call.1} parent=11 // pred_region
          _
        $region20: #{tpu_custom_call.1} parent=11 // pred_fallthru
          _
      $region12: #{tpu_custom_call.1} parent=5 // pred_fallthru
        _
      %p177 = scmp.lt.s32.totalorder %s20, 2
      // Predicated region
      $region21: #{tpu_custom_call.1} parent=5 // pred_check
        %p178 = pneg %p177
      $region22: #{tpu_custom_call.1} parent=5 // pred_check_branch
        %180 = sbr.rel (%p178) target = $region24
      $region23: #{tpu_custom_call.1} parent=5 // pred_region
        // Predicated region
        $region25: #{tpu_custom_call.1} parent=23 // pred_check
          %p181 = pneg %p54
        $region26: #{tpu_custom_call.1} parent=23 // pred_check_branch
          %183 = sbr.rel (%p181) target = $region28
        $region27: #{tpu_custom_call.1} parent=23 // pred_region
          %s184 = sand.u32 %s44, 1
          %s185 = scalar_lea.sflag [#allocation3], %s184
          %s186 = sand.u32 %s44, 1
          %s187 = smul.addr %s186, 64
          %s188 = scalar_lea.vmem [#allocation2], %s187
          %s189 = sadd.s32 %s27, %s28
          %s190 = smul.u32 16, %s189
          %s192 = ssub.s32 1024, 1024
          %193 = vsyncadd %s185, %s192
          %s194 = smul.addr %s190, 64
          %s195 = scalar_lea.hbm %s0, %s194
          %s196 = sshll.u32 %s188, 4
          %s197 = int_to_ptr.vmem [resolvable:$true] %s196
          %202 = dma.hbm_to_vmem [thread:$0]  %s195, 1024, %s197, %s185, 64, 64, 4
        $region28: #{tpu_custom_call.1} parent=23 // pred_fallthru
          _
      $region24: #{tpu_custom_call.1} parent=5 // pred_fallthru
        _
      %p203 = scmp.le.s32.totalorder 1, %s20
      %p204 = scmp.lt.s32.totalorder %s20, 3
      %p205 = pnand %p203, %p204
      %p206 = pneg %p205
      // Predicated region
      $region29: #{tpu_custom_call.1} parent=5 // pred_check
        _
      $region30: #{tpu_custom_call.1} parent=5 // pred_check_branch
        %208 = sbr.rel (%p205) target = $region32
      $region31: #{tpu_custom_call.1} parent=5 // pred_region
        %s209 = ssub.s32 %s20, 1
        %s210 = sand.u32 %s47, 1
        %s211 = scalar_lea.sflag [#allocation3], %s210
        %s212 = sand.u32 %s47, 1
        %s213 = smul.addr %s212, 64
        %s214 = scalar_lea.vmem [#allocation2], %s213
        // Predicated region
        $region33: #{tpu_custom_call.1} parent=31 // pred_check
          %p215 = pneg %p60
        $region34: #{tpu_custom_call.1} parent=31 // pred_check_branch
          %217 = sbr.rel (%p215) target = $region36
        $region35: #{tpu_custom_call.1} parent=31 // pred_region
          %218 = dma.done %s211, 1024
        $region36: #{tpu_custom_call.1} parent=31 // pred_fallthru
          _
        %s219 = sand.u32 %s47, 1
        %s220 = scalar_lea.sflag [#allocation3], %s219
        %s221 = sand.u32 %s47, 1
        %s222 = smul.addr %s221, 64
        %s223 = scalar_lea.vmem [#allocation2], %s222
        %p224 = pneg %p60
        %p225 = pneg %p57
        %p226 = pneg %p81
        %p227 = pneg %p78
        %p228 = pneg %p102
        %p229 = pneg %p99
        %p230 = pneg %p130
        %p231 = pneg %p127
        %s232 = sand.u32 %s117, 1
        %s233 = scalar_lea.sflag [#allocation4], %s232
        %s234 = sand.u32 %s117, 1
        %s235 = smul.addr %s234, 4
        %s236 = scalar_lea.vmem [#allocation5], %s235
        %p237 = pneg %p156
        %p238 = pneg %p153
        %s239 = sand.u32 %s143, 1
        %s240 = scalar_lea.sflag [#allocation7], %s239
        %s241 = sand.u32 %s143, 1
        %s242 = smul.addr %s241, 8
        %s243 = scalar_lea.vmem [#allocation6], %s242
        %s244 = sadd.s32 %s29, %s30
        %s245 = smul.u32 16, %s244
        %s246 = sadd.s32 %s29, %s30
        %p248 = scmp.eq.s32.totalorder %s30, 0
        // Predicated region
        $region37: #{tpu_custom_call.1} parent=31 // pred_check
          %p249 = pneg %p248
        $region38: #{tpu_custom_call.1} parent=31 // pred_check_branch
          %251 = sbr.rel (%p249) target = $region40
        $region39: #{tpu_custom_call.1} parent=31 // pred_region
          %252 = vst [vmem:[%s243] sm:$0xff] 0.0
        $region40: #{tpu_custom_call.1} parent=31 // pred_fallthru
          _
        %v253 = vld [vmem:[%s214] sm:$0xf]
        %v254 = vld [vmem:[%s214 + $0x4] sm:$0xf]
        %v255 = vld [vmem:[%s214 + $0x8] sm:$0xf]
        %v256 = vld [vmem:[%s214 + $0xc] sm:$0xf]
        %v257 = vld [vmem:[%s214 + $0x10] sm:$0xf]
        %v258 = vld [vmem:[%s214 + $0x14] sm:$0xf]
        %v259 = vld [vmem:[%s214 + $0x18] sm:$0xf]
        %v260 = vld [vmem:[%s214 + $0x1c] sm:$0xf]
        %v261 = vld [vmem:[%s214 + $0x20] sm:$0xf]
        %v262 = vld [vmem:[%s214 + $0x24] sm:$0xf]
        %v263 = vld [vmem:[%s214 + $0x28] sm:$0xf]
        %v264 = vld [vmem:[%s214 + $0x2c] sm:$0xf]
        %v265 = vld [vmem:[%s214 + $0x30] sm:$0xf]
        %v266 = vld [vmem:[%s214 + $0x34] sm:$0xf]
        %v267 = vld [vmem:[%s214 + $0x38] sm:$0xf]
        %v268 = vld [vmem:[%s214 + $0x3c] sm:$0xf]
        %v269 = vld [vmem:[%s1] sm:$0xf]
        %v286 = vunpack.c.l.b16 %v253
        %v287 = vunpack.c.l.b16 %v254
        %v288 = vunpack.c.l.b16 %v255
        %v289 = vunpack.c.l.b16 %v256
        %v290 = vunpack.c.l.b16 %v257
        %v291 = vunpack.c.l.b16 %v258
        %v292 = vunpack.c.l.b16 %v259
        %v293 = vunpack.c.l.b16 %v260
        %v294 = vunpack.c.l.b16 %v261
        %v295 = vunpack.c.l.b16 %v262
        %v296 = vunpack.c.l.b16 %v263
        %v297 = vunpack.c.l.b16 %v264
        %v298 = vunpack.c.l.b16 %v265
        %v299 = vunpack.c.l.b16 %v266
        %v300 = vunpack.c.l.b16 %v267
        %v301 = vunpack.c.l.b16 %v268
        %v302 = vpack.c.b16 %v287, %v286
        %v303 = vpack.c.b16 %v289, %v288
        %v304 = vpack.c.b16 %v291, %v290
        %v305 = vpack.c.b16 %v293, %v292
        %v306 = vpack.c.b16 %v295, %v294
        %v307 = vpack.c.b16 %v297, %v296
        %v308 = vpack.c.b16 %v299, %v298
        %v309 = vpack.c.b16 %v301, %v300
        %318 = vmatprep.subr.bf16.mxu0 0
        %319 = vmatpush1.bf16.xpose.msra.mxu0 %v309
        %320 = vmatprep.subr.bf16.mxu0 0
        %321 = vmatpush1.bf16.xpose.msra.mxu0 %v308
        %322 = vmatprep.subr.bf16.mxu0 0
        %323 = vmatpush1.bf16.xpose.msra.mxu0 %v307
        %324 = vmatprep.subr.bf16.mxu0 0
        %325 = vmatpush1.bf16.xpose.msra.mxu0 %v306
        %326 = vmatprep.subr.bf16.mxu0 0
        %327 = vmatpush1.bf16.xpose.msra.mxu0 %v305
        %328 = vmatprep.subr.bf16.mxu0 0
        %329 = vmatpush1.bf16.xpose.msra.mxu0 %v304
        %330 = vmatprep.subr.bf16.mxu0 0
        %331 = vmatpush1.bf16.xpose.msra.mxu0 %v303
        %332 = vmatprep.subr.bf16.mxu0 0
        %333 = vmatpush1.bf16.xpose.msra.mxu0 %v302
        %334 = vmatprep.subr.bf16.mxu0 0
        %335 = vmatpush2.bf16.xpose.msra.mxu0 0
        %336 = vmatprep.subr.bf16.mxu0 0
        %337 = vmatpush2.bf16.xpose.msra.mxu0 0
        %338 = vmatprep.subr.bf16.mxu0 0
        %339 = vmatpush2.bf16.xpose.msra.mxu0 0
        %340 = vmatprep.subr.bf16.mxu0 0
        %341 = vmatpush2.bf16.xpose.msra.mxu0 0
        %342 = vmatprep.subr.bf16.mxu0 0
        %343 = vmatpush2.bf16.xpose.msra.mxu0 0
        %344 = vmatprep.subr.bf16.mxu0 0
        %345 = vmatpush2.bf16.xpose.msra.mxu0 0
        %346 = vmatprep.subr.bf16.mxu0 0
        %347 = vmatpush2.bf16.xpose.msra.mxu0 0
        %348 = vmatprep.subr.bf16.mxu0 0
        %349 = vmatpush2.bf16.xpose.msra.mxu0 0
        %350 = vmatprep.mubr.bf16.mxu0 0
        %351 = vmatmul.mubr.bf16.gmra.mxu0 %v269
        %v352 = vpop.f32.mrf.mxu0
        %v353 = vadd.f32 0.0, %v352
        %v354 = vpop.f32.mrf.mxu0
        %v355 = vpop.f32.mrf.mxu0
        %v356 = vpop.f32.mrf.mxu0
        %357 = vdwg.mxu0
        %v358 = vld [vmem:[%s2] sm:$0xff]
        %360 = vset.pattern.permute.xlu0 0
        %361 = vperm.xlu0 %360, %v358
        %v362 = vpop.permute.xlu0 %361
        %v364 = vmul.f32 %v353, %v362
        %v365 = vrot.slane %v364, 4
        %v366 = vmax.f32 %v364, %v365
        %v367 = vrot.slane %v366, 2
        %v368 = vmax.f32 %v366, %v367
        %v369 = vrot.slane %v368, 1
        %v370 = vmax.f32 %v368, %v369
        %v371 = vsub.f32 %v364, %v370
        %v372 = vmul.f32 %v371, 1.442695
        %v373 = vpow.pop %v372
        %v374 = vlaneseq
        %v375 = vshrl.u32 %v374, 7
        %v376 = vrot.slane %v373, 4
        %v377 = vmax.f32 %v373, %v376
        %v378 = vrot.slane %v377, 2
        %v379 = vmax.f32 %v377, %v378
        %v380 = vrot.slane %v379, 1
        %v381 = vmax.f32 %v379, %v380
        %vm382 = vcmp.eq.f32.partialorder %v373, %v381
        %v383 = vsel %vm382, %v375, 8
        %v384 = vrot.slane %v383, 4
        %vm385 = vcmp.lt.s32.totalorder %v383, %v384
        %v386 = vsel %vm385, %v383, %v384
        %v387 = vrot.slane %v386, 2
        %vm388 = vcmp.lt.s32.totalorder %v386, %v387
        %v389 = vsel %vm388, %v386, %v387
        %v390 = vrot.slane %v389, 1
        %vm391 = vcmp.lt.s32.totalorder %v389, %v390
        %v392 = vsel %vm391, %v389, %v390
        %vm393 = vcmp.eq.s32.totalorder %v375, %v392
        %v394 = vsel %vm393, -inf, %v373
        %v395 = vrot.slane %v394, 4
        %v396 = vmax.f32 %v394, %v395
        %v397 = vrot.slane %v396, 2
        %v398 = vmax.f32 %v396, %v397
        %v399 = vrot.slane %v398, 1
        %v400 = vmax.f32 %v398, %v399
        %vm401 = vcmp.eq.f32.partialorder %v394, %v400
        %v402 = vsel %vm401, %v375, 8
        %v403 = vrot.slane %v402, 4
        %vm404 = vcmp.lt.s32.totalorder %v402, %v403
        %v405 = vsel %vm404, %v402, %v403
        %v406 = vrot.slane %v405, 2
        %vm407 = vcmp.lt.s32.totalorder %v405, %v406
        %v408 = vsel %vm407, %v405, %v406
        %v409 = vrot.slane %v408, 1
        %vm410 = vcmp.lt.s32.totalorder %v408, %v409
        %v411 = vsel %vm410, %v408, %v409
        %vm412 = vcmp.eq.s32.totalorder %v375, %v411
        %vm413 = vmor %vm393, %vm412
        %v414 = vsel %vm413, %v373, 0.0
        %v415 = vadd.f32 %v381, %v400
        %v416 = vrcp.pop %v415
        %v417 = vmul.f32 %v414, %v416
        %v418 = vpack.c.bf16 %v417, %v417
        %419 = vst [vmem:[%s236] sm:$0xf] %v418
        %v420 = vld [vmem:[%s243] sm:$0xff]
        %421 = vmatprep.subr.bf16.mxu0 0
        %422 = vmatpush1.bf16.msra.mxu0 %v309
        %423 = vmatprep.subr.bf16.mxu0 0
        %424 = vmatpush1.bf16.msra.mxu0 %v308
        %425 = vmatprep.subr.bf16.mxu0 0
        %426 = vmatpush1.bf16.msra.mxu0 %v307
        %427 = vmatprep.subr.bf16.mxu0 0
        %428 = vmatpush1.bf16.msra.mxu0 %v306
        %429 = vmatprep.subr.bf16.mxu0 0
        %430 = vmatpush1.bf16.msra.mxu0 %v305
        %431 = vmatprep.subr.bf16.mxu0 0
        %432 = vmatpush1.bf16.msra.mxu0 %v304
        %433 = vmatprep.subr.bf16.mxu0 0
        %434 = vmatpush1.bf16.msra.mxu0 %v303
        %435 = vmatprep.subr.bf16.mxu0 0
        %436 = vmatpush1.bf16.msra.mxu0 %v302
        %437 = vmatprep.subr.bf16.mxu0 0
        %438 = vmatpush2.bf16.msra.mxu0 0
        %439 = vmatprep.subr.bf16.mxu0 0
        %440 = vmatpush2.bf16.msra.mxu0 0
        %441 = vmatprep.subr.bf16.mxu0 0
        %442 = vmatpush2.bf16.msra.mxu0 0
        %443 = vmatprep.subr.bf16.mxu0 0
        %444 = vmatpush2.bf16.msra.mxu0 0
        %445 = vmatprep.subr.bf16.mxu0 0
        %446 = vmatpush2.bf16.msra.mxu0 0
        %447 = vmatprep.subr.bf16.mxu0 0
        %448 = vmatpush2.bf16.msra.mxu0 0
        %449 = vmatprep.subr.bf16.mxu0 0
        %450 = vmatpush2.bf16.msra.mxu0 0
        %451 = vmatprep.subr.bf16.mxu0 0
        %452 = vmatpush2.bf16.msra.mxu0 0
        %453 = vmatprep.mubr.bf16.mxu0 0
        %454 = vmatmul.mubr.bf16.gmra.mxu0 %v418
        %v455 = vpop.f32.mrf.mxu0
        %v456 = vadd.f32 0.0, %v455
        %v457 = vpop.f32.mrf.mxu0
        %v458 = vpop.f32.mrf.mxu0
        %v459 = vpop.f32.mrf.mxu0
        %460 = vdwg.mxu0
        %v461 = vadd.f32 %v420, %v456
        %462 = vst [vmem:[%s243] sm:$0xff] %v461
        %s463 = sand.u32 %s117, 1
        %s464 = scalar_lea.sflag [#allocation4], %s463
        %s465 = sand.u32 %s117, 1
        %s466 = smul.addr %s465, 4
        %s467 = scalar_lea.vmem [#allocation5], %s466
        %s468 = sand.u32 %s143, 1
        %s469 = scalar_lea.sflag [#allocation7], %s468
        %s470 = sand.u32 %s143, 1
        %s471 = smul.addr %s470, 8
        %s472 = scalar_lea.vmem [#allocation6], %s471
        // Predicated region
        $region41: #{tpu_custom_call.1} parent=31 // pred_check
          %p473 = pneg %p127
        $region42: #{tpu_custom_call.1} parent=31 // pred_check_branch
          %475 = sbr.rel (%p473) target = $region44
        $region43: #{tpu_custom_call.1} parent=31 // pred_region
          %s476 = sadd.s32 %s29, %s30
          %s478 = ssub.s32 64, 64
          %479 = vsyncadd %s464, %s478
          %s480 = smul.addr %s476, 64
          %s481 = scalar_lea.hbm %s3, %s480
          %s483 = sshll.u32 %s467, 4
          %s484 = int_to_ptr.vmem [resolvable:$true] %s483
          %486 = dma.vmem_to_hbm [thread:$0]  %s484, 64, %s481, %s464
        $region44: #{tpu_custom_call.1} parent=31 // pred_fallthru
          _
        // Predicated region
        $region45: #{tpu_custom_call.1} parent=31 // pred_check
          %p487 = pneg %p153
        $region46: #{tpu_custom_call.1} parent=31 // pred_check_branch
          %489 = sbr.rel (%p487) target = $region48
        $region47: #{tpu_custom_call.1} parent=31 // pred_region
          %s491 = ssub.s32 128, 128
          %492 = vsyncadd %s469, %s491
          %s493 = smul.addr %s29, 128
          %s494 = scalar_lea.hbm %s4, %s493
          %s496 = sshll.u32 %s472, 4
          %s497 = int_to_ptr.vmem [resolvable:$true] %s496
          %499 = dma.vmem_to_hbm [thread:$0]  %s497, 128, %s494, %s469
        $region48: #{tpu_custom_call.1} parent=31 // pred_fallthru
          _
      $region32: #{tpu_custom_call.1} parent=5 // pred_fallthru
        _
      %p500 = scmp.le.s32.totalorder 2, %s20
      // Predicated region
      $region49: #{tpu_custom_call.1} parent=5 // pred_check
        %p501 = pneg %p500
      $region50: #{tpu_custom_call.1} parent=5 // pred_check_branch
        %503 = sbr.rel (%p501) target = $region52
      $region51: #{tpu_custom_call.1} parent=5 // pred_region
        %s504 = ssub.s32 %s20, 2
        // Predicated region
        $region53: #{tpu_custom_call.1} parent=51 // pred_check
          %p505 = pneg %p133
        $region54: #{tpu_custom_call.1} parent=51 // pred_check_branch
          %507 = sbr.rel (%p505) target = $region56
        $region55: #{tpu_custom_call.1} parent=51 // pred_region
          %s508 = sand.u32 %s118, 1
          %s509 = scalar_lea.sflag [#allocation4], %s508
          %s510 = sand.u32 %s118, 1
          %s511 = smul.addr %s510, 4
          %s512 = scalar_lea.vmem [#allocation5], %s511
          %513 = dma.done %s509, 64
        $region56: #{tpu_custom_call.1} parent=51 // pred_fallthru
          _
        // Predicated region
        $region57: #{tpu_custom_call.1} parent=51 // pred_check
          %p514 = pneg %p159
        $region58: #{tpu_custom_call.1} parent=51 // pred_check_branch
          %516 = sbr.rel (%p514) target = $region60
        $region59: #{tpu_custom_call.1} parent=51 // pred_region
          %s517 = sand.u32 %s144, 1
          %s518 = scalar_lea.sflag [#allocation7], %s517
          %s519 = sand.u32 %s144, 1
          %s520 = smul.addr %s519, 8
          %s521 = scalar_lea.vmem [#allocation6], %s520
          %522 = dma.done %s518, 128
        $region60: #{tpu_custom_call.1} parent=51 // pred_fallthru
          _
      $region52: #{tpu_custom_call.1} parent=5 // pred_fallthru
        _
    $region6: #{tpu_custom_call.1} parent=1 // loop_footer
      %s24 = sadd.s32 1, %s20
    $region7: #{tpu_custom_call.1} parent=1 // loop_footer_branch
      %19 = sbr.rel target = $region3
    $region8: #{tpu_custom_call.1} parent=1 // loop_exit
      _
    %523 = vsyncpa [#allocation3], 1
    %s524 = scalar_lea.sflag [#allocation3], 1
    %525 = vsyncpa %s524, 1
    %526 = vsyncpa [#allocation4], 1
    %s527 = scalar_lea.sflag [#allocation4], 1
    %528 = vsyncpa %s527, 1
    %529 = vsyncpa [#allocation7], 1
    %s530 = scalar_lea.sflag [#allocation7], 1
    %531 = vsyncpa %s530, 1

</llo_original>
